<compile_context>
chip_gen: v7x
topology: tpu7x:2x2x1
jax: 0.10.0
libtpu: 0.0.40
codegen_flags: <defaults>
</compile_context>

<pallas_src>
import math

import jax
import jax.numpy as jnp
from jax.experimental import pallas as pl
from jax.experimental.pallas import tpu as pltpu


# ----------------------------------------------------------------------------
# Plain-JAX glue: gatherFeature / convWeights (external helpers in the source).
# ----------------------------------------------------------------------------
def gather_feature(children_list, node_emb):
    """children_list: (B,N,C) int32, 0 = no child, k>0 -> node k-1.
    node_emb: (B,N,D).  Returns (B, N, C+1, D): [parent, children...]."""
    B, N, D = node_emb.shape
    padded = jnp.concatenate(
        [jnp.zeros((B, 1, D), node_emb.dtype), node_emb], axis=1)             # (B,N+1,D)
    children_feat = jax.vmap(lambda cl, emb: emb[cl])(children_list, padded)  # (B,N,C,D)
    parent_feat = node_emb[:, :, None, :]                                     # (B,N,1,D)
    return jnp.concatenate([parent_feat, children_feat], axis=2)              # (B,N,C+1,D)


def conv_weights(children_list):
    """Standard TBCNN continuous-binary-tree coefficients.
    Returns (B, N, C+1, 3) with last dim = (eta_top, eta_left, eta_right)."""
    B, N, C = children_list.shape
    mask = (children_list > 0).astype(jnp.float32)                            # (B,N,C)
    num_children = jnp.sum(mask, axis=-1, keepdims=True)                      # (B,N,1)
    pos = jnp.arange(C, dtype=jnp.float32)[None, None, :]                     # child idx i-1
    denom = jnp.maximum(num_children - 1.0, 1.0)
    eta_r = jnp.where(num_children > 1, pos / denom, 0.5) * mask
    eta_l = jnp.where(num_children > 1, 1.0 - pos / denom, 0.5) * mask
    eta_t = jnp.zeros_like(mask)
    w_children = jnp.stack([eta_t, eta_l, eta_r], axis=-1)                    # (B,N,C,3)
    w_parent = jnp.broadcast_to(
        jnp.array([1.0, 0.0, 0.0], jnp.float32), (B, N, 1, 3))
    return jnp.concatenate([w_parent, w_children], axis=2)                    # (B,N,C+1,3)


# ----------------------------------------------------------------------------
# Small helpers
# ----------------------------------------------------------------------------
def _round_up(n, m):
    return -(-n // m) * m


def _pad_axis(x, axis, target):
    cur = x.shape[axis]
    if cur == target:
        return x
    pad = [(0, 0)] * x.ndim
    pad[axis] = (0, target - cur)
    return jnp.pad(x, pad)


def _pick_tile(total, target, mult):
    """Largest tile <= target dividing `total`, multiple of `mult`; else full."""
    if total <= target:
        return total
    t = (target // mult) * mult
    while t >= mult:
        if total % t == 0:
            return t
        t -= mult
    return total


def _vmem_limit_bytes(tbh, tn, k3, h1p, h2p, in_itemsize):
    """Rough scoped-VMEM budget from the chosen tiles (double-buffered)."""
    rows = 2 * tbh * tn
    wf_tile = rows * _round_up(k3, 128) * in_itemsize          # input feature tile
    h_tile = rows * h1p * 4                                    # Linear1 output + tanh
    params = (_round_up(k3, 8) * h1p + h1p + h1p * h2p + h2p) * 4
    acc = 2 * max(tbh, 8) * h1p * 4
    total = 2 * wf_tile + 2 * h_tile + 2 * params + acc + (2 << 20)
    return int(min(max(total, 32 << 20), 96 << 20))


# ----------------------------------------------------------------------------
# Fused kernel: Linear(3D->H1)+Tanh -> running max-pool over node tiles ->
# Linear(H1->H2)+Tanh -> cosine similarity between the two trees of each pair.
# ----------------------------------------------------------------------------
def _tbcnn_kernel(wf_ref, w1_ref, b1_ref, w2_ref, b2_ref, sim_ref, acc_ref):
    """Grid = (batch-pair tile ["parallel"], node tile ["arbitrary"]).

    wf_ref : (2, TBh, TN, 3D)   tree-conv weighted feature tile (pair-major)
    w1_ref : (3D, H1p)          tbconv weight   (resident: block (0,0))
    b1_ref : (1, H1p)
    w2_ref : (H1p, H2p)         head weight     (resident: block (0,0))
    b2_ref : (1, H2p)
    sim_ref: (TBh, 1)           cosine similarity (written at last node tile)
    acc_ref: (2, TBh, H1p) f32  running max-pool accumulator (VMEM scratch)
    """
    n_idx = pl.program_id(1)
    _, tbh, tn, k3 = wf_ref.shape
    h1p = w1_ref.shape[1]

    @pl.when(n_idx == 0)
    def _():
        acc_ref[...] = jnp.full(acc_ref.shape, -jnp.inf, jnp.float32)

    # tbconv: Linear(3D -> H1) + Tanh over all 2*TBh*TN rows in ONE MXU push
    # (contraction depth K = 3D, f32 accumulation regardless of input dtype).
    rows = 2 * tbh * tn
    wf = wf_ref[...].reshape(rows, k3)
    h = jnp.tanh(jnp.dot(wf, w1_ref[...], preferred_element_type=jnp.float32)
                 + b1_ref[...])                                   # (rows, H1p) f32

    # pool_tree: partial max over this node tile, folded into the running
    # accumulator (cheap VPU maximum across node tiles; never hits HBM).
    part = jnp.max(h.reshape(2, tbh, tn, h1p), axis=2)            # (2, TBh, H1p)
    acc_ref[...] = jnp.maximum(acc_ref[...], part)

    # linear + cosine similarity: only at the last node tile.
    @pl.when(n_idx == pl.num_programs(1) - 1)
    def _():
        def head(x):   # Linear(H1 -> H2) + Tanh
            return jnp.tanh(jnp.dot(x, w2_ref[...],
                                    preferred_element_type=jnp.float32)
                            + b2_ref[...])

        v1 = head(acc_ref[0])                                     # (TBh, H2p)
        v2 = head(acc_ref[1])                                     # (TBh, H2p)
        eps = jnp.float32(1e-8)
        num = jnp.sum(v1 * v2, axis=-1, keepdims=True)            # (TBh, 1)
        n1sq = jnp.sum(v1 * v1, axis=-1, keepdims=True)
        n2sq = jnp.sum(v2 * v2, axis=-1, keepdims=True)
        # single EUP rsqrt instead of 2x sqrt + a VPU divide
        sim_ref[...] = num * jax.lax.rsqrt(jnp.maximum(n1sq * n2sq, eps * eps))


# ----------------------------------------------------------------------------
# Wrapper
# ----------------------------------------------------------------------------
def tbcnn_forward(children_list, node_emb, params, *,
                  matmul_dtype=jnp.float32, tbh_target=8, tn_target=256):
    w1, b1, w2, b2 = params
    B, N, C = children_list.shape
    D = node_emb.shape[-1]
    assert B % 2 == 0, "batch must contain clone pairs"
    Bh = B // 2
    K3 = 3 * D
    H1, H2 = w1.shape[1], w2.shape[1]

    # ---- wrapper-side prep (fuses with the gather under XLA) ----------------
    # Tree-conv weighting done lane-dense here: the kernel sees a (., 3D)
    # feature with no sub-128-lane (C+1=5 / k=3) contractions on its critical
    # path.
    feature = gather_feature(children_list, node_emb)                  # (B,N,C+1,D)
    weights = conv_weights(children_list)                              # (B,N,C+1,3)
    wf = jnp.einsum('bnck,bncd->bnkd', weights, feature).reshape(B, N, K3)
    # Pair-major layout: wf_p[0, i] / wf_p[1, i] are the two trees of pair i,
    # so the in-kernel cosine only indexes the leading axis.
    wf_p = jnp.stack([wf[:Bh], wf[Bh:]], axis=0).astype(matmul_dtype)  # (2,Bh,N,3D)

    # Lane-dense params: zero-pad H1/H2 up to multiples of 128. Padded columns
    # are tanh(0)=0 and meet zero rows of w2 -> semantics unchanged.
    H1p = _round_up(H1, 128)
    H2p = _round_up(H2, 128)
    w1p = _pad_axis(w1, 1, H1p).astype(matmul_dtype)                   # (3D, H1p)
    b1p = _pad_axis(b1, 1, H1p).astype(jnp.float32)                    # (1, H1p)
    w2p = _pad_axis(_pad_axis(w2, 1, H2p), 0, H1p).astype(jnp.float32)  # (H1p, H2p)
    b2p = _pad_axis(b2, 1, H2p).astype(jnp.float32)                    # (1, H2p)

    # ---- tiling --------------------------------------------------------------
    # TODO(synk): padded / non-multiple-of-8 node counts need a validity mask
    # before the max-pool (padding rows would contribute tanh(b1)).
    TBh = _pick_tile(Bh, tbh_target, 8)
    TN = _pick_tile(N, tn_target, 8)
    grid = (Bh // TBh, N // TN)

    vmem_limit = _vmem_limit_bytes(TBh, TN, K3, H1p, H2p,
                                   jnp.dtype(matmul_dtype).itemsize)
    in_bytes = jnp.dtype(matmul_dtype).itemsize
    cost = pl.CostEstimate(
        flops=2 * B * N * K3 * H1p + 2 * B * H1p * H2p,
        transcendentals=B * N * H1p + B * H2p,
        bytes_accessed=(2 * Bh * N * K3 + K3 * H1p) * in_bytes
                       + (H1p + H1p * H2p + H2p + Bh) * 4,
    )

    sim = pl.pallas_call(
        _tbcnn_kernel,
        out_shape=jax.ShapeDtypeStruct((Bh, 1), jnp.float32),
        grid_spec=pltpu.PrefetchScalarGridSpec(
            num_scalar_prefetch=0,
            grid=grid,
            in_specs=[
                pl.BlockSpec((2, TBh, TN, K3), lambda p, n: (0, p, n, 0)),
                pl.BlockSpec((K3, H1p), lambda p, n: (0, 0)),
                pl.BlockSpec((1, H1p), lambda p, n: (0, 0)),
                pl.BlockSpec((H1p, H2p), lambda p, n: (0, 0)),
                pl.BlockSpec((1, H2p), lambda p, n: (0, 0)),
            ],
            out_specs=pl.BlockSpec((TBh, 1), lambda p, n: (p, 0)),
            scratch_shapes=[pltpu.VMEM((2, TBh, H1p), jnp.float32)],
        ),
        compiler_params=pltpu.CompilerParams(
            dimension_semantics=("parallel", "arbitrary"),
            vmem_limit_bytes=vmem_limit,
        ),
        cost_estimate=cost,
    )(wf_p, w1p, b1p, w2p, b2p)
    return sim.reshape(Bh)


# ----------------------------------------------------------------------------
# Pure-JAX reference for verification.
# ----------------------------------------------------------------------------
def tbcnn_reference(children_list, node_emb, params):
    w1, b1, w2, b2 = params
    feature = gather_feature(children_list, node_emb)                   # (B,N,C+1,D)
    weights = conv_weights(children_list)                               # (B,N,C+1,3)
    wf = jnp.einsum('bnck,bncd->bnkd', weights, feature)                # (B,N,3,D)
    B, N = wf.shape[:2]
    wf = wf.reshape(B, N, -1)                                           # (B,N,3D)
    out = jnp.tanh(wf @ w1 + b1[0])                                     # tbconv
    out = jnp.max(out, axis=1)                                          # pool_tree
    out = jnp.tanh(out @ w2 + b2[0])                                    # linear
    half = B // 2
    v1, v2 = out[:half], out[half:]
    eps = 1e-8
    num = jnp.sum(v1 * v2, axis=-1)
    n1 = jnp.sqrt(jnp.sum(v1 * v1, axis=-1))
    n2 = jnp.sqrt(jnp.sum(v2 * v2, axis=-1))
    return num / jnp.maximum(n1 * n2, eps)


if __name__ == "__main__":
    # channels = (D, H1, H2)
    D, H1, H2 = 16, 32, 32
    B, N, C = 4, 8, 4  # batch (2 pairs), max nodes, max children

    key = jax.random.PRNGKey(0)
    k1, k2, k3, k4, k5, k6 = jax.random.split(key, 6)

    # Deterministic parameter init (PyTorch init_params re-inits tbconv twice
    # with std_linear and never touches self.linear -- deterministic normals).
    std_tbconv = 1.0 / math.sqrt(D)
    std_linear = 1.0 / math.sqrt(H1)
    w1 = (std_linear * jax.random.normal(k1, (3 * D, H1))).astype(jnp.float32)
    b1 = (2 * std_linear * jax.random.normal(k2, (1, H1))).astype(jnp.float32)
    w2 = (std_linear * jax.random.normal(k3, (H1, H2))).astype(jnp.float32)
    b2 = (2 * std_linear * jax.random.normal(k4, (1, H2))).astype(jnp.float32)
    params = (w1, b1, w2, b2)

    children_list = jax.random.randint(k5, (B, N, C), 0, N + 1, dtype=jnp.int32)
    node_emb = jax.random.normal(k6, (B, N, D), dtype=jnp.float32)

    # TODO(synk): on v6e/v7x pass matmul_dtype=jnp.bfloat16 (halves HBM traffic
    # and VMEM footprint of the feature; f32 accumulation preserved).
    sim = tbcnn_forward(children_list, node_emb, params)
    sim = jax.block_until_ready(sim)

    ref = tbcnn_reference(children_list, node_emb, params)
    assert sim.shape == (B // 2,)
    assert jnp.allclose(sim, ref, rtol=1e-2, atol=1e-2), (sim, ref)

    print("KERNEL_OK")
</pallas_src>

<mosaic_0001>
module attributes {stable_mosaic.version = 11 : i64} {
  func.func @_tbcnn_kernel(%arg0: i32, %arg1: i32, %arg2: memref<2x2x8x48xf32, #tpu.memory_space<vmem>>, %arg3: memref<48x128xf32, #tpu.memory_space<vmem>>, %arg4: memref<1x128xf32, #tpu.memory_space<vmem>>, %arg5: memref<128x128xf32, #tpu.memory_space<vmem>>, %arg6: memref<1x128xf32, #tpu.memory_space<vmem>>, %arg7: memref<2x1xf32, #tpu.memory_space<vmem>>, %arg8: memref<2x2x128xf32, #tpu.memory_space<vmem>>) attributes {dimension_semantics = [#tpu.dimension_semantics<parallel>, #tpu.dimension_semantics<arbitrary>], iteration_bounds = array<i64: 1, 1>, scalar_prefetch = 0 : i64, scratch_operands = 1 : i64, tpu.core_type = #tpu.core_type<tc>, window_params = [{transform_indices = @transform_0, window_bounds = array<i64: 2, 2, 8, 48>}, {pipeline_mode = #tpu.pipeline_mode<synchronous>, transform_indices = @transform_1, window_bounds = array<i64: 48, 128>}, {pipeline_mode = #tpu.pipeline_mode<synchronous>, transform_indices = @transform_2, window_bounds = array<i64: 1, 128>}, {pipeline_mode = #tpu.pipeline_mode<synchronous>, transform_indices = @transform_3, window_bounds = array<i64: 128, 128>}, {pipeline_mode = #tpu.pipeline_mode<synchronous>, transform_indices = @transform_4, window_bounds = array<i64: 1, 128>}, {transform_indices = @transform_5, window_bounds = array<i64: 2, 1>}]} {
    %c0_i32 = arith.constant 0 : i32
    %0 = arith.cmpi eq, %arg1, %c0_i32 : i32
    %1 = arith.extui %0 : i1 to i32
    %c0_i32_0 = arith.constant 0 : i32
    %2 = arith.cmpi ne, %1, %c0_i32_0 : i32
    scf.if %2 {
      %cst_17 = arith.constant 0xFF800000 : f32
      %19 = vector.broadcast %cst_17 : f32 to vector<2x2x128xf32>
      %c0_18 = arith.constant 0 : index
      %c0_19 = arith.constant 0 : index
      %c0_20 = arith.constant 0 : index
      %20 = vector.load %arg8[%c0_18, %c0_19, %c0_20] : memref<2x2x128xf32, #tpu.memory_space<vmem>>, vector<2x2x128xf32>
      tpu.vector_store %arg8[%c0_18, %c0_19, %c0_20], %19 {strides = array<i32>} : memref<2x2x128xf32, #tpu.memory_space<vmem>>, vector<2x2x128xf32>,
    } else {
    }
    %c0 = arith.constant 0 : index
    %c0_1 = arith.constant 0 : index
    %c0_2 = arith.constant 0 : index
    %c0_3 = arith.constant 0 : index
    %3 = vector.load %arg2[%c0, %c0_1, %c0_2, %c0_3] : memref<2x2x8x48xf32, #tpu.memory_space<vmem>>, vector<2x2x8x48xf32>
    %4 = vector.shape_cast %3 : vector<2x2x8x48xf32> to vector<32x48xf32>
    %c0_4 = arith.constant 0 : index
    %c0_5 = arith.constant 0 : index
    %5 = vector.load %arg3[%c0_4, %c0_5] : memref<48x128xf32, #tpu.memory_space<vmem>>, vector<48x128xf32>
    %cst = arith.constant dense<0.000000e+00> : vector<32x128xf32>
    %6 = tpu.matmul %4, %5, %cst {dimension_numbers = #tpu.dot_dimension_numbers<[1], [0], [0], [1], [0, 0, 1, 1], [], []>} : vector<32x48xf32>, vector<48x128xf32>, vector<32x128xf32> -> vector<32x128xf32>
    %c0_6 = arith.constant 0 : index
    %c0_7 = arith.constant 0 : index
    %7 = vector.load %arg4[%c0_6, %c0_7] : memref<1x128xf32, #tpu.memory_space<vmem>>, vector<1x128xf32>
    %8 = vector.broadcast %7 : vector<1x128xf32> to vector<32x128xf32>
    %9 = arith.addf %6, %8 : vector<32x128xf32>
    %10 = math.tanh %9 : vector<32x128xf32>
    %11 = vector.shape_cast %10 : vector<32x128xf32> to vector<2x2x8x128xf32>
    %cst_8 = arith.constant dense<0xFF800000> : vector<2x2x128xf32>
    %12 = vector.multi_reduction <maximumf>, %11, %cst_8 [2] : vector<2x2x8x128xf32> to vector<2x2x128xf32>
    %c0_9 = arith.constant 0 : index
    %c0_10 = arith.constant 0 : index
    %c0_11 = arith.constant 0 : index
    %13 = vector.load %arg8[%c0_9, %c0_10, %c0_11] : memref<2x2x128xf32, #tpu.memory_space<vmem>>, vector<2x2x128xf32>
    %14 = arith.maximumf %13, %12 : vector<2x2x128xf32>
    %c0_12 = arith.constant 0 : index
    %c0_13 = arith.constant 0 : index
    %c0_14 = arith.constant 0 : index
    %15 = vector.load %arg8[%c0_12, %c0_13, %c0_14] : memref<2x2x128xf32, #tpu.memory_space<vmem>>, vector<2x2x128xf32>
    tpu.vector_store %arg8[%c0_12, %c0_13, %c0_14], %14 {strides = array<i32>} : memref<2x2x128xf32, #tpu.memory_space<vmem>>, vector<2x2x128xf32>,
    %c0_i32_15 = arith.constant 0 : i32
    %16 = arith.cmpi eq, %arg1, %c0_i32_15 : i32
    %17 = arith.extui %16 : i1 to i32
    %c0_i32_16 = arith.constant 0 : i32
    %18 = arith.cmpi ne, %17, %c0_i32_16 : i32
    scf.if %18 {
      %c0_17 = arith.constant 0 : index
      %c0_18 = arith.constant 0 : index
      %c0_19 = arith.constant 0 : index
      %19 = vector.load %arg8[%c0_17, %c0_18, %c0_19] : memref<2x2x128xf32, #tpu.memory_space<vmem>>, vector<1x2x128xf32>
      %20 = vector.shape_cast %19 : vector<1x2x128xf32> to vector<2x128xf32>
      %c0_20 = arith.constant 0 : index
      %c0_21 = arith.constant 0 : index
      %21 = vector.load %arg5[%c0_20, %c0_21] : memref<128x128xf32, #tpu.memory_space<vmem>>, vector<128x128xf32>
      %cst_22 = arith.constant dense<0.000000e+00> : vector<2x128xf32>
      %22 = tpu.matmul %20, %21, %cst_22 {dimension_numbers = #tpu.dot_dimension_numbers<[1], [0], [0], [1], [0, 0, 1, 1], [], []>} : vector<2x128xf32>, vector<128x128xf32>, vector<2x128xf32> -> vector<2x128xf32>
      %c0_23 = arith.constant 0 : index
      %c0_24 = arith.constant 0 : index
      %23 = vector.load %arg6[%c0_23, %c0_24] : memref<1x128xf32, #tpu.memory_space<vmem>>, vector<1x128xf32>
      %24 = vector.broadcast %23 : vector<1x128xf32> to vector<2x128xf32>
      %25 = arith.addf %22, %24 : vector<2x128xf32>
      %26 = math.tanh %25 : vector<2x128xf32>
      %c1 = arith.constant 1 : index
      %c0_25 = arith.constant 0 : index
      %c0_26 = arith.constant 0 : index
      %27 = vector.load %arg8[%c1, %c0_25, %c0_26] : memref<2x2x128xf32, #tpu.memory_space<vmem>>, vector<1x2x128xf32>
      %28 = vector.shape_cast %27 : vector<1x2x128xf32> to vector<2x128xf32>
      %c0_27 = arith.constant 0 : index
      %c0_28 = arith.constant 0 : index
      %29 = vector.load %arg5[%c0_27, %c0_28] : memref<128x128xf32, #tpu.memory_space<vmem>>, vector<128x128xf32>
      %cst_29 = arith.constant dense<0.000000e+00> : vector<2x128xf32>
      %30 = tpu.matmul %28, %29, %cst_29 {dimension_numbers = #tpu.dot_dimension_numbers<[1], [0], [0], [1], [0, 0, 1, 1], [], []>} : vector<2x128xf32>, vector<128x128xf32>, vector<2x128xf32> -> vector<2x128xf32>
      %c0_30 = arith.constant 0 : index
      %c0_31 = arith.constant 0 : index
      %31 = vector.load %arg6[%c0_30, %c0_31] : memref<1x128xf32, #tpu.memory_space<vmem>>, vector<1x128xf32>
      %32 = vector.broadcast %31 : vector<1x128xf32> to vector<2x128xf32>
      %33 = arith.addf %30, %32 : vector<2x128xf32>
      %34 = math.tanh %33 : vector<2x128xf32>
      %35 = arith.mulf %26, %34 : vector<2x128xf32>
      %cst_32 = arith.constant dense<0.000000e+00> : vector<2xf32>
      %36 = vector.multi_reduction <add>, %35, %cst_32 [1] : vector<2x128xf32> to vector<2xf32>
      %37 = vector.shape_cast %36 : vector<2xf32> to vector<2x1xf32>
      %38 = arith.mulf %26, %26 : vector<2x128xf32>
      %cst_33 = arith.constant dense<0.000000e+00> : vector<2xf32>
      %39 = vector.multi_reduction <add>, %38, %cst_33 [1] : vector<2x128xf32> to vector<2xf32>
      %40 = vector.shape_cast %39 : vector<2xf32> to vector<2x1xf32>
      %41 = arith.mulf %34, %34 : vector<2x128xf32>
      %cst_34 = arith.constant dense<0.000000e+00> : vector<2xf32>
      %42 = vector.multi_reduction <add>, %41, %cst_34 [1] : vector<2x128xf32> to vector<2xf32>
      %43 = vector.shape_cast %42 : vector<2xf32> to vector<2x1xf32>
      %44 = arith.mulf %40, %43 : vector<2x1xf32>
      %cst_35 = arith.constant 9.99999993E-9 : f32
      %cst_36 = arith.constant 9.99999993E-9 : f32
      %45 = arith.mulf %cst_35, %cst_36 : f32
      %46 = vector.broadcast %45 : f32 to vector<2x1xf32>
      %47 = arith.maximumf %44, %46 : vector<2x1xf32>
      %48 = math.rsqrt %47 : vector<2x1xf32>
      %49 = arith.mulf %37, %48 : vector<2x1xf32>
      %c0_37 = arith.constant 0 : index
      %c0_38 = arith.constant 0 : index
      %50 = vector.load %arg7[%c0_37, %c0_38] : memref<2x1xf32, #tpu.memory_space<vmem>>, vector<2x1xf32>
      tpu.vector_store %arg7[%c0_37, %c0_38], %49 {strides = array<i32>} : memref<2x1xf32, #tpu.memory_space<vmem>>, vector<2x1xf32>,
    } else {
    }
    return
  }
  func.func @transform_0(%arg0: i32, %arg1: i32) -> (i32, i32, i32, i32) {
    %c0_i32 = arith.constant 0 : i32
    %c0_i32_0 = arith.constant 0 : i32
    %c0_i32_1 = arith.constant 0 : i32
    return %c0_i32, %arg0, %arg1, %c0_i32_0 : i32, i32, i32, i32
  }
  func.func @transform_1(%arg0: i32, %arg1: i32) -> (i32, i32) {
    %c0_i32 = arith.constant 0 : i32
    %c0_i32_0 = arith.constant 0 : i32
    %c0_i32_1 = arith.constant 0 : i32
    return %c0_i32, %c0_i32_0 : i32, i32
  }
  func.func @transform_2(%arg0: i32, %arg1: i32) -> (i32, i32) {
    %c0_i32 = arith.constant 0 : i32
    %c0_i32_0 = arith.constant 0 : i32
    %c0_i32_1 = arith.constant 0 : i32
    return %c0_i32, %c0_i32_0 : i32, i32
  }
  func.func @transform_3(%arg0: i32, %arg1: i32) -> (i32, i32) {
    %c0_i32 = arith.constant 0 : i32
    %c0_i32_0 = arith.constant 0 : i32
    %c0_i32_1 = arith.constant 0 : i32
    return %c0_i32, %c0_i32_0 : i32, i32
  }
  func.func @transform_4(%arg0: i32, %arg1: i32) -> (i32, i32) {
    %c0_i32 = arith.constant 0 : i32
    %c0_i32_0 = arith.constant 0 : i32
    %c0_i32_1 = arith.constant 0 : i32
    return %c0_i32, %c0_i32_0 : i32, i32
  }
  func.func @transform_5(%arg0: i32, %arg1: i32) -> (i32, i32) {
    %c0_i32 = arith.constant 0 : i32
    %c0_i32_0 = arith.constant 0 : i32
    return %arg0, %c0_i32 : i32, i32
  }
}

</mosaic_0001>

<llo_original>
// kernel: tpu_custom_call.1
$region0: #{tpu_custom_call.1}
  #allocation0 [shape = 'u32[]', space=smem, size = 0x4, offset = 0x4, fixed_abs, tag = 'smem constant byte address 0x4 - core index']
  #allocation1 [shape = 'u32[144,128]{1,0:T(1,128)}', space=vmem, size = 0x12000, scoped, tag = 'internal scratch']
  #allocation2 [shape = 'f32[2,2,128]{2,1,0:T(2,128)}', space=vmem, size = 0x800, scoped, tag = 'scratch operand']
  %s0 = inlined_call_operand.hbm [shape: f32[2,2,8,48], index: 0, kind: input, shape index: {}]
  %s1 = inlined_call_operand.hbm [shape: f32[48,128], index: 1, kind: input, shape index: {}]
  %s2 = inlined_call_operand.vmem [shape: f32[1,128], index: 2, kind: input, shape index: {}]
  %s3 = inlined_call_operand.hbm [shape: f32[128,128], index: 3, kind: input, shape index: {}]
  %s4 = inlined_call_operand.vmem [shape: f32[1,128], index: 4, kind: input, shape index: {}]
  %s5 = inlined_call_operand.vmem [shape: f32[2,1], index: 5, kind: output, shape index: {}]
  %s6 = sld [smem:[#allocation0]]
  $region50: #{tpu_custom_call.1} parent=0
    _
  %s8 = ssub.s32 1, %s6
  %s9 = scalar_select 0, %s8, %s6
  $region1: #{tpu_custom_call.1} parent=0
    #allocation3 [shape = 'u8[16384]{0}', space=vmem, size = 0x4000, scoped, tag = 'input window, operand 0, single buffered']
    #allocation4 [shape = 's32[1]{0}', space=sflag, size = 0x4, scoped, tag = 'scoped memory for tpu_custom_call.1']
    #allocation5 [shape = 'u8[24576]{0}', space=vmem, size = 0x6000, scoped, tag = 'input window, operand 1, single buffered']
    #allocation6 [shape = 's32[1]{0}', space=sflag, size = 0x4, scoped, tag = 'scoped memory for tpu_custom_call.1']
    #allocation7 [shape = 'u8[65536]{0}', space=vmem, size = 0x10000, scoped, tag = 'input window, operand 3, single buffered']
    %10 = vsyncpa [#allocation4], 0
    %11 = vsyncpa [#allocation6], 0
    // Predicated region
    $region2: #{tpu_custom_call.1} parent=1 // pred_check
      _
    $region3: #{tpu_custom_call.1} parent=1 // pred_check_branch
      %13 = sbr.rel (0) target = $region5
    $region4: #{tpu_custom_call.1} parent=1 // pred_region
      %s15 = ssub.s32 512, 512
      %16 = vsyncadd [#allocation4], %s15
      %s17 = sshll.u32 [#allocation3], 4
      %s18 = int_to_ptr.vmem [resolvable:$true] %s17
      %23 = dma.hbm_to_vmem [thread:$0]  %s0, 512, %s18, [#allocation4], 128, 128, 8
    $region5: #{tpu_custom_call.1} parent=1 // pred_fallthru
      _
    // Predicated region
    $region6: #{tpu_custom_call.1} parent=1 // pred_check
      _
    $region7: #{tpu_custom_call.1} parent=1 // pred_check_branch
      %25 = sbr.rel (0) target = $region9
    $region8: #{tpu_custom_call.1} parent=1 // pred_region
      %s27 = ssub.s32 768, 768
      %28 = vsyncadd [#allocation6], %s27
      %s29 = sshll.u32 [#allocation5], 4
      %s30 = int_to_ptr.vmem [resolvable:$true] %s29
      %35 = dma.hbm_to_vmem [thread:$0]  %s1, 768, %s30, [#allocation6], 128, 128, 8
    $region9: #{tpu_custom_call.1} parent=1 // pred_fallthru
      _
    // Predicated region
    $region10: #{tpu_custom_call.1} parent=1 // pred_check
      _
    $region11: #{tpu_custom_call.1} parent=1 // pred_check_branch
      %37 = sbr.rel (0) target = $region13
    $region12: #{tpu_custom_call.1} parent=1 // pred_region
      _
    $region13: #{tpu_custom_call.1} parent=1 // pred_fallthru
      _
    // Predicated region
    $region14: #{tpu_custom_call.1} parent=1 // pred_check
      _
    $region15: #{tpu_custom_call.1} parent=1 // pred_check_branch
      %39 = sbr.rel (0) target = $region17
    $region16: #{tpu_custom_call.1} parent=1 // pred_region
      %s41 = ssub.s32 2048, 2048
      %42 = vsyncadd [#allocation6], %s41
      %s43 = sshll.u32 [#allocation7], 4
      %s44 = int_to_ptr.vmem [resolvable:$true] %s43
      %49 = dma.hbm_to_vmem [thread:$0]  %s3, 2048, %s44, [#allocation6], 128, 128, 8
    $region17: #{tpu_custom_call.1} parent=1 // pred_fallthru
      _
    // Predicated region
    $region18: #{tpu_custom_call.1} parent=1 // pred_check
      _
    $region19: #{tpu_custom_call.1} parent=1 // pred_check_branch
      %51 = sbr.rel (0) target = $region21
    $region20: #{tpu_custom_call.1} parent=1 // pred_region
      _
    $region21: #{tpu_custom_call.1} parent=1 // pred_fallthru
      _
    // Predicated region
    $region22: #{tpu_custom_call.1} parent=1 // pred_check
      _
    $region23: #{tpu_custom_call.1} parent=1 // pred_check_branch
      %53 = sbr.rel (0) target = $region25
    $region24: #{tpu_custom_call.1} parent=1 // pred_region
      %54 = dma.done [#allocation4], 512
    $region25: #{tpu_custom_call.1} parent=1 // pred_fallthru
      _
    // Predicated region
    $region26: #{tpu_custom_call.1} parent=1 // pred_check
      _
    $region27: #{tpu_custom_call.1} parent=1 // pred_check_branch
      %56 = sbr.rel (0) target = $region29
    $region28: #{tpu_custom_call.1} parent=1 // pred_region
      %57 = dma.done [#allocation6], 768
    $region29: #{tpu_custom_call.1} parent=1 // pred_fallthru
      _
    // Predicated region
    $region30: #{tpu_custom_call.1} parent=1 // pred_check
      _
    $region31: #{tpu_custom_call.1} parent=1 // pred_check_branch
      %59 = sbr.rel (0) target = $region33
    $region32: #{tpu_custom_call.1} parent=1 // pred_region
      %60 = dma.done [#allocation6], 2048
    $region33: #{tpu_custom_call.1} parent=1 // pred_fallthru
      _
    %p61 = scmp.eq.s32.totalorder 0, 0
    // Predicated region
    $region34: #{tpu_custom_call.1} parent=1 // pred_check
      %p62 = pneg %p61
    $region35: #{tpu_custom_call.1} parent=1 // pred_check_branch
      %64 = sbr.rel (%p62) target = $region37
    $region36: #{tpu_custom_call.1} parent=1 // pred_region
      %65 = vst [vmem:[#allocation2] sm:$0x3] -inf
      %66 = vst [vmem:[#allocation2 + $0x2] sm:$0x3] -inf
    $region37: #{tpu_custom_call.1} parent=1 // pred_fallthru
      _
    %v67 = vld [vmem:[#allocation3] sm:$0xff]
    %v68 = vld [vmem:[#allocation3 + $0x8] sm:$0xff]
    %v69 = vld [vmem:[#allocation3 + $0x10] sm:$0xff]
    %v70 = vld [vmem:[#allocation3 + $0x18] sm:$0xff]
    %v71 = vld [vmem:[#allocation5] sm:$0xff]
    %v72 = vld [vmem:[#allocation5 + $0x8] sm:$0xff]
    %v73 = vld [vmem:[#allocation5 + $0x10] sm:$0xff]
    %v74 = vld [vmem:[#allocation5 + $0x18] sm:$0xff]
    %v75 = vld [vmem:[#allocation5 + $0x20] sm:$0xff]
    %v76 = vld [vmem:[#allocation5 + $0x28] sm:$0xff]
    %v77 = vld [vmem:[%s2] sm:$0x1]
    %v79 = vlaneseq
    %v80 = vshrl.u32 %v79, 7
    %v81 = vsub.s32 0, %v80
    %v82 = vrot.slane %v77, %v81
    %vm84 = vcmask 392192
    %v86 = vsel %vm84, %v67, 0
    %v89 = vsel %vm84, %v68, 0
    %v92 = vsel %vm84, %v69, 0
    %v95 = vsel %vm84, %v70, 0
    %97 = vmatprep.subr.mxu0 0.0
    %98 = vmatpush1.msra.mxu0 %v71
    %99 = vmatprep.subr.mxu0 0.0
    %100 = vmatpush1.msra.mxu0 %v72
    %101 = vmatprep.subr.mxu0 0.0
    %102 = vmatpush1.msra.mxu0 %v73
    %103 = vmatprep.subr.mxu0 0.0
    %104 = vmatpush1.msra.mxu0 %v74
    %105 = vmatprep.subr.mxu0 0.0
    %106 = vmatpush1.msra.mxu0 %v75
    %107 = vmatprep.subr.mxu0 0.0
    %108 = vmatpush1.msra.mxu0 %v76
    %109 = vmatprep.subr.mxu0 0.0
    %110 = vmatpush1.msra.mxu0 0.0
    %111 = vmatprep.subr.mxu0 0.0
    %112 = vmatpush1.msra.mxu0 0.0
    %113 = vmatprep.subr.mxu0 0.0
    %114 = vmatpush1.msra.mxu0 0.0
    %115 = vmatprep.subr.mxu0 0.0
    %116 = vmatpush1.msra.mxu0 0.0
    %117 = vmatprep.subr.mxu0 0.0
    %118 = vmatpush1.msra.mxu0 0.0
    %119 = vmatprep.subr.mxu0 0.0
    %120 = vmatpush1.msra.mxu0 0.0
    %121 = vmatprep.subr.mxu0 0.0
    %122 = vmatpush1.msra.mxu0 0.0
    %123 = vmatprep.subr.mxu0 0.0
    %124 = vmatpush1.msra.mxu0 0.0
    %125 = vmatprep.subr.mxu0 0.0
    %126 = vmatpush1.msra.mxu0 0.0
    %127 = vmatprep.subr.mxu0 0.0
    %128 = vmatpush1.msra.mxu0 0.0
    %129 = vmatprep.subr.mxu0 0.0
    %130 = vmatpush1.msra.mxu0 0.0
    %131 = vmatprep.subr.mxu0 0.0
    %132 = vmatpush1.msra.mxu0 0.0
    %133 = vmatprep.subr.mxu0 0.0
    %134 = vmatpush1.msra.mxu0 0.0
    %135 = vmatprep.subr.mxu0 0.0
    %136 = vmatpush1.msra.mxu0 0.0
    %137 = vmatprep.subr.mxu0 0.0
    %138 = vmatpush1.msra.mxu0 0.0
    %139 = vmatprep.subr.mxu0 0.0
    %140 = vmatpush1.msra.mxu0 0.0
    %141 = vmatprep.subr.mxu0 0.0
    %142 = vmatpush1.msra.mxu0 0.0
    %143 = vmatprep.subr.mxu0 0.0
    %144 = vmatpush1.msra.mxu0 0.0
    %145 = vmatprep.subr.mxu0 0.0
    %146 = vmatpush1.msra.mxu0 0.0
    %147 = vmatprep.subr.mxu0 0.0
    %148 = vmatpush1.msra.mxu0 0.0
    %149 = vmatprep.subr.mxu0 0.0
    %150 = vmatpush1.msra.mxu0 0.0
    %151 = vmatprep.subr.mxu0 0.0
    %152 = vmatpush1.msra.mxu0 0.0
    %153 = vmatprep.subr.mxu0 0.0
    %154 = vmatpush1.msra.mxu0 0.0
    %155 = vmatprep.subr.mxu0 0.0
    %156 = vmatpush1.msra.mxu0 0.0
    %157 = vmatprep.subr.mxu0 0.0
    %158 = vmatpush1.msra.mxu0 0.0
    %159 = vmatprep.subr.mxu0 0.0
    %160 = vmatpush1.msra.mxu0 0.0
    %161 = vmatprep.mubr.f32.mxu0 0.0
    %162 = vmatmul.mubr.f32.gmra.mrb[0].mxu0 %v86
    %v163 = vpop.f32.mrb[0].mxu0
    %v164 = vadd.f32 %v82, %v163
    %v165 = vpop.f32.mrb[0].mxu0
    %166 = vmatprep.mubr.f32.mxu0 0.0
    %167 = vmatmul.mubr.f32.gmra.mrb[0].mxu0 %v89
    %v168 = vpop.f32.mrb[0].mxu0
    %v169 = vadd.f32 %v82, %v168
    %v170 = vpop.f32.mrb[0].mxu0
    %171 = vmatprep.mubr.f32.mxu0 0.0
    %172 = vmatmul.mubr.f32.gmra.mrb[0].mxu0 %v92
    %v173 = vpop.f32.mrb[0].mxu0
    %v174 = vadd.f32 %v82, %v173
    %v175 = vpop.f32.mrb[0].mxu0
    %176 = vmatprep.mubr.f32.mxu0 0.0
    %177 = vmatmul.mubr.f32.gmra.mrb[0].mxu0 %v95
    %v178 = vpop.f32.mrb[0].mxu0
    %v179 = vadd.f32 %v82, %v178
    %v180 = vpop.f32.mrb[0].mxu0
    %181 = vdwg.mxu0
    %v182 = vtanh.pop %v164
    %v183 = vtanh.pop %v169
    %v184 = vtanh.pop %v174
    %v185 = vtanh.pop %v179
    %v186 = vrot.slane %v182, 4
    %v187 = vmax.f32 %v182, %v186
    %v188 = vrot.slane %v187, 2
    %v189 = vmax.f32 %v187, %v188
    %v190 = vrot.slane %v189, 1
    %v191 = vmax.f32 %v189, %v190
    %v192 = vrot.slane %v183, 4
    %v193 = vmax.f32 %v183, %v192
    %v194 = vrot.slane %v193, 2
    %v195 = vmax.f32 %v193, %v194
    %v196 = vrot.slane %v195, 1
    %v197 = vmax.f32 %v195, %v196
    %v198 = vrot.slane %v184, 4
    %v199 = vmax.f32 %v184, %v198
    %v200 = vrot.slane %v199, 2
    %v201 = vmax.f32 %v199, %v200
    %v202 = vrot.slane %v201, 1
    %v203 = vmax.f32 %v201, %v202
    %v204 = vrot.slane %v185, 4
    %v205 = vmax.f32 %v185, %v204
    %v206 = vrot.slane %v205, 2
    %v207 = vmax.f32 %v205, %v206
    %v208 = vrot.slane %v207, 1
    %v209 = vmax.f32 %v207, %v208
    %v210 = vld [vmem:[#allocation2] sm:$0x3]
    %v211 = vld [vmem:[#allocation2 + $0x2] sm:$0x3]
    %vm216 = vcmask 1041409
    %v217 = vsel %vm216, %v197, %v191
    %v218 = vsel %vm216, %v209, %v203
    %v221 = vmax.f32 %v210, %v217
    %v222 = vmax.f32 %v211, %v218
    %223 = vst [vmem:[#allocation2] sm:$0x3] %v221
    %224 = vst [vmem:[#allocation2 + $0x2] sm:$0x3] %v222
    // Predicated region
    $region38: #{tpu_custom_call.1} parent=1 // pred_check
      %p225 = pneg %p61
    $region39: #{tpu_custom_call.1} parent=1 // pred_check_branch
      %227 = sbr.rel (%p225) target = $region41
    $region40: #{tpu_custom_call.1} parent=1 // pred_region
      %v228 = vld [vmem:[#allocation2] sm:$0x3]
      %v229 = vld [vmem:[#allocation7] sm:$0xff]
      %v230 = vld [vmem:[#allocation7 + $0x8] sm:$0xff]
      %v231 = vld [vmem:[#allocation7 + $0x10] sm:$0xff]
      %v232 = vld [vmem:[#allocation7 + $0x18] sm:$0xff]
      %v233 = vld [vmem:[#allocation7 + $0x20] sm:$0xff]
      %v234 = vld [vmem:[#allocation7 + $0x28] sm:$0xff]
      %v235 = vld [vmem:[#allocation7 + $0x30] sm:$0xff]
      %v236 = vld [vmem:[#allocation7 + $0x38] sm:$0xff]
      %v237 = vld [vmem:[#allocation7 + $0x40] sm:$0xff]
      %v238 = vld [vmem:[#allocation7 + $0x48] sm:$0xff]
      %v239 = vld [vmem:[#allocation7 + $0x50] sm:$0xff]
      %v240 = vld [vmem:[#allocation7 + $0x58] sm:$0xff]
      %v241 = vld [vmem:[#allocation7 + $0x60] sm:$0xff]
      %v242 = vld [vmem:[#allocation7 + $0x68] sm:$0xff]
      %v243 = vld [vmem:[#allocation7 + $0x70] sm:$0xff]
      %v244 = vld [vmem:[#allocation7 + $0x78] sm:$0xff]
      %v245 = vld [vmem:[%s4] sm:$0x1]
      %v247 = vlaneseq
      %v248 = vshrl.u32 %v247, 7
      %v249 = vsub.s32 0, %v248
      %v250 = vrot.slane %v245, %v249
      %252 = vmatprep.subr.mxu0 0.0
      %253 = vmatpush1.msra.mxu0 %v229
      %254 = vmatprep.subr.mxu0 0.0
      %255 = vmatpush1.msra.mxu0 %v230
      %256 = vmatprep.subr.mxu0 0.0
      %257 = vmatpush1.msra.mxu0 %v231
      %258 = vmatprep.subr.mxu0 0.0
      %259 = vmatpush1.msra.mxu0 %v232
      %260 = vmatprep.subr.mxu0 0.0
      %261 = vmatpush1.msra.mxu0 %v233
      %262 = vmatprep.subr.mxu0 0.0
      %263 = vmatpush1.msra.mxu0 %v234
      %264 = vmatprep.subr.mxu0 0.0
      %265 = vmatpush1.msra.mxu0 %v235
      %266 = vmatprep.subr.mxu0 0.0
      %267 = vmatpush1.msra.mxu0 %v236
      %268 = vmatprep.subr.mxu0 0.0
      %269 = vmatpush1.msra.mxu0 %v237
      %270 = vmatprep.subr.mxu0 0.0
      %271 = vmatpush1.msra.mxu0 %v238
      %272 = vmatprep.subr.mxu0 0.0
      %273 = vmatpush1.msra.mxu0 %v239
      %274 = vmatprep.subr.mxu0 0.0
      %275 = vmatpush1.msra.mxu0 %v240
      %276 = vmatprep.subr.mxu0 0.0
      %277 = vmatpush1.msra.mxu0 %v241
      %278 = vmatprep.subr.mxu0 0.0
      %279 = vmatpush1.msra.mxu0 %v242
      %280 = vmatprep.subr.mxu0 0.0
      %281 = vmatpush1.msra.mxu0 %v243
      %282 = vmatprep.subr.mxu0 0.0
      %283 = vmatpush1.msra.mxu0 %v244
      %284 = vmatprep.subr.mxu0 0.0
      %285 = vmatpush1.msra.mxu0 0.0
      %286 = vmatprep.subr.mxu0 0.0
      %287 = vmatpush1.msra.mxu0 0.0
      %288 = vmatprep.subr.mxu0 0.0
      %289 = vmatpush1.msra.mxu0 0.0
      %290 = vmatprep.subr.mxu0 0.0
      %291 = vmatpush1.msra.mxu0 0.0
      %292 = vmatprep.subr.mxu0 0.0
      %293 = vmatpush1.msra.mxu0 0.0
      %294 = vmatprep.subr.mxu0 0.0
      %295 = vmatpush1.msra.mxu0 0.0
      %296 = vmatprep.subr.mxu0 0.0
      %297 = vmatpush1.msra.mxu0 0.0
      %298 = vmatprep.subr.mxu0 0.0
      %299 = vmatpush1.msra.mxu0 0.0
      %300 = vmatprep.subr.mxu0 0.0
      %301 = vmatpush1.msra.mxu0 0.0
      %302 = vmatprep.subr.mxu0 0.0
      %303 = vmatpush1.msra.mxu0 0.0
      %304 = vmatprep.subr.mxu0 0.0
      %305 = vmatpush1.msra.mxu0 0.0
      %306 = vmatprep.subr.mxu0 0.0
      %307 = vmatpush1.msra.mxu0 0.0
      %308 = vmatprep.subr.mxu0 0.0
      %309 = vmatpush1.msra.mxu0 0.0
      %310 = vmatprep.subr.mxu0 0.0
      %311 = vmatpush1.msra.mxu0 0.0
      %312 = vmatprep.subr.mxu0 0.0
      %313 = vmatpush1.msra.mxu0 0.0
      %314 = vmatprep.subr.mxu0 0.0
      %315 = vmatpush1.msra.mxu0 0.0
      %316 = vmatprep.mubr.f32.mxu0 0.0
      %317 = vmatmul.mubr.f32.gmra.mrb[0].mxu0 %v228
      %v318 = vpop.f32.mrb[0].mxu0
      %v319 = vadd.f32 %v250, %v318
      %v320 = vpop.f32.mrb[0].mxu0
      %321 = vdwg.mxu0
      %v322 = vtanh.pop %v319
      %s323 = scalar_lea.vmem [#allocation2], 2
      %v324 = vld [vmem:[%s323] sm:$0x3]
      %325 = vmatprep.subr.mxu0 0.0
      %326 = vmatpush1.msra.mxu0 %v229
      %327 = vmatprep.subr.mxu0 0.0
      %328 = vmatpush1.msra.mxu0 %v230
      %329 = vmatprep.subr.mxu0 0.0
      %330 = vmatpush1.msra.mxu0 %v231
      %331 = vmatprep.subr.mxu0 0.0
      %332 = vmatpush1.msra.mxu0 %v232
      %333 = vmatprep.subr.mxu0 0.0
      %334 = vmatpush1.msra.mxu0 %v233
      %335 = vmatprep.subr.mxu0 0.0
      %336 = vmatpush1.msra.mxu0 %v234
      %337 = vmatprep.subr.mxu0 0.0
      %338 = vmatpush1.msra.mxu0 %v235
      %339 = vmatprep.subr.mxu0 0.0
      %340 = vmatpush1.msra.mxu0 %v236
      %341 = vmatprep.subr.mxu0 0.0
      %342 = vmatpush1.msra.mxu0 %v237
      %343 = vmatprep.subr.mxu0 0.0
      %344 = vmatpush1.msra.mxu0 %v238
      %345 = vmatprep.subr.mxu0 0.0
      %346 = vmatpush1.msra.mxu0 %v239
      %347 = vmatprep.subr.mxu0 0.0
      %348 = vmatpush1.msra.mxu0 %v240
      %349 = vmatprep.subr.mxu0 0.0
      %350 = vmatpush1.msra.mxu0 %v241
      %351 = vmatprep.subr.mxu0 0.0
      %352 = vmatpush1.msra.mxu0 %v242
      %353 = vmatprep.subr.mxu0 0.0
      %354 = vmatpush1.msra.mxu0 %v243
      %355 = vmatprep.subr.mxu0 0.0
      %356 = vmatpush1.msra.mxu0 %v244
      %357 = vmatprep.subr.mxu0 0.0
      %358 = vmatpush1.msra.mxu0 0.0
      %359 = vmatprep.subr.mxu0 0.0
      %360 = vmatpush1.msra.mxu0 0.0
      %361 = vmatprep.subr.mxu0 0.0
      %362 = vmatpush1.msra.mxu0 0.0
      %363 = vmatprep.subr.mxu0 0.0
      %364 = vmatpush1.msra.mxu0 0.0
      %365 = vmatprep.subr.mxu0 0.0
      %366 = vmatpush1.msra.mxu0 0.0
      %367 = vmatprep.subr.mxu0 0.0
      %368 = vmatpush1.msra.mxu0 0.0
      %369 = vmatprep.subr.mxu0 0.0
      %370 = vmatpush1.msra.mxu0 0.0
      %371 = vmatprep.subr.mxu0 0.0
      %372 = vmatpush1.msra.mxu0 0.0
      %373 = vmatprep.subr.mxu0 0.0
      %374 = vmatpush1.msra.mxu0 0.0
      %375 = vmatprep.subr.mxu0 0.0
      %376 = vmatpush1.msra.mxu0 0.0
      %377 = vmatprep.subr.mxu0 0.0
      %378 = vmatpush1.msra.mxu0 0.0
      %379 = vmatprep.subr.mxu0 0.0
      %380 = vmatpush1.msra.mxu0 0.0
      %381 = vmatprep.subr.mxu0 0.0
      %382 = vmatpush1.msra.mxu0 0.0
      %383 = vmatprep.subr.mxu0 0.0
      %384 = vmatpush1.msra.mxu0 0.0
      %385 = vmatprep.subr.mxu0 0.0
      %386 = vmatpush1.msra.mxu0 0.0
      %387 = vmatprep.subr.mxu0 0.0
      %388 = vmatpush1.msra.mxu0 0.0
      %389 = vmatprep.mubr.f32.mxu0 0.0
      %390 = vmatmul.mubr.f32.gmra.mrb[0].mxu0 %v324
      %v391 = vpop.f32.mrb[0].mxu0
      %v392 = vadd.f32 %v250, %v391
      %v393 = vpop.f32.mrb[0].mxu0
      %394 = vdwg.mxu0
      %v395 = vtanh.pop %v392
      %v396 = vmul.f32 %v322, %v395
      %vm397 = vcmask 1041408
      %v398 = vsel %vm397, %v396, 0.0
      %399 = vadd.xlane.f32.xlu0 %v398
      %v400 = vpop.xlane.xlu0 %399
      %v401 = vmul.f32 %v322, %v322
      %v402 = vsel %vm397, %v401, 0.0
      %403 = vadd.xlane.f32.xlu0 %v402
      %v404 = vpop.xlane.xlu0 %403
      %v405 = vmul.f32 %v395, %v395
      %v406 = vsel %vm397, %v405, 0.0
      %407 = vadd.xlane.f32.xlu0 %v406
      %v408 = vpop.xlane.xlu0 %407
      %v409 = vmul.f32 %v404, %v408
      %v410 = vmax.f32 %v409, 1e-16
      %v411 = vrsqrt.pop %v410
      %v412 = vmul.f32 %v400, %v411
      %vm413 = vcmask 1024
      %414 = vst.msk [vmem:[%s5] sm:$0x3] %vm413, %v412
    $region41: #{tpu_custom_call.1} parent=1 // pred_fallthru
      _
    // Predicated region
    $region42: #{tpu_custom_call.1} parent=1 // pred_check
      _
    $region43: #{tpu_custom_call.1} parent=1 // pred_check_branch
      %416 = sbr.rel (0) target = $region45
    $region44: #{tpu_custom_call.1} parent=1 // pred_region
      _
    $region45: #{tpu_custom_call.1} parent=1 // pred_fallthru
      _
    // Predicated region
    $region46: #{tpu_custom_call.1} parent=1 // pred_check
      _
    $region47: #{tpu_custom_call.1} parent=1 // pred_check_branch
      %418 = sbr.rel (0) target = $region49
    $region48: #{tpu_custom_call.1} parent=1 // pred_region
      _
    $region49: #{tpu_custom_call.1} parent=1 // pred_fallthru
      _
    %419 = vsyncpa [#allocation4], 1
    %420 = vsyncpa [#allocation6], 1

</llo_original>
